<compile_context>
chip_gen: v6e
topology: v6e:2x2x1
jax: 0.10.0
libtpu: 0.0.40
codegen_flags: <defaults>
</compile_context>

<pallas_src>
import math
import jax
import jax.numpy as jnp
from jax.experimental import pallas as pl
from jax.experimental.pallas import tpu as pltpu

# ----------------------------------------------------------------------------------------
# Small, deterministic configuration (module defaults are m=200, ch=96, dz=10; we scale
# down but keep the structure: 3 EMLPBlocks + final Linear to a 4-dim (2*T(1)) output).
# ----------------------------------------------------------------------------------------
M = 32            # number of kept points (self.m)
DZ = 8            # noise dimension (self.dz)
CH = 32           # hidden channel width (uniform_rep(ch, SO(2)).size())
NUM_LAYERS = 3
THRESHOLD = 0.1
NOISE_SCALE = 1.0
D_IN = 3 * M + 2 * DZ          # rep_in size: m*T(0) + (m+dz)*T(1)  ->  m + 2*(m+dz) = 112
D_IN_PAD = 128                 # lane-aligned feature dim (zero-padded)
D_OUT = 4                      # rep_out size: 2*T(1) of SO(2)
GS_EPS = 1e-12

MAX_TB = 512                   # batch tile (sweepable: 512 / 1024 / 2048)


def _round_up(n, k):
    return ((n + k - 1) // k) * k


# ----------------------------------------------------------------------------------------
# Pallas kernel: emlp_G matmul chain + reshape/transpose + Gram-Schmidt + det-sign fix.
# x tile is (TB, 128) bf16; weights are bf16 and VMEM-resident; accumulation and the
# postprocessing math are f32.
# ----------------------------------------------------------------------------------------
def _swish(x):
    return x * jax.nn.sigmoid(x)


def _emlp_postproc_kernel(x_ref,
                          w0_ref, b0_ref,
                          w1_ref, b1_ref,
                          w2_ref, b2_ref,
                          w3_ref, b3_ref,
                          o_ref):
    h = x_ref[...]                                                               # (TB, 128) bf16
    h = jnp.dot(h, w0_ref[...], preferred_element_type=jnp.float32) + b0_ref[...]
    h = _swish(h).astype(jnp.bfloat16)
    h = jnp.dot(h, w1_ref[...], preferred_element_type=jnp.float32) + b1_ref[...]
    h = _swish(h).astype(jnp.bfloat16)
    h = jnp.dot(h, w2_ref[...], preferred_element_type=jnp.float32) + b2_ref[...]
    h = _swish(h).astype(jnp.bfloat16)
    g = jnp.dot(h, w3_ref[...], preferred_element_type=jnp.float32) + b3_ref[...]  # (TB, 4) f32

    # gs = g.reshape(B,2,2).transpose(-1,-2)  ->  gs = [[g0, g2], [g1, g3]], so its columns are
    #   col0 = (g0, g1),  col1 = (g2, g3)
    c0x = g[:, 0:1]
    c0y = g[:, 1:2]
    c1x = g[:, 2:3]
    c1y = g[:, 3:4]

    # batched Gram-Schmidt over the 2 columns of the 2x2 matrix; rsqrt -> EUP, eps for safety
    inv_n0 = jax.lax.rsqrt(c0x * c0x + c0y * c0y + GS_EPS)
    u0x = c0x * inv_n0
    u0y = c0y * inv_n0
    proj = c1x * u0x + c1y * u0y
    wx = c1x - proj * u0x
    wy = c1y - proj * u0y
    inv_n1 = jax.lax.rsqrt(wx * wx + wy * wy + GS_EPS)
    u1x = wx * inv_n1
    u1y = wy * inv_n1

    # det of the orthonormalized matrix; column 0 is scaled by det (sign_arr[:, 0] = det)
    det = u0x * u1y - u0y * u1x

    # row-major flatten of the (B, 2, 2) result: [[det*u0x, u1x], [det*u0y, u1y]]
    o_ref[:, 0:1] = det * u0x
    o_ref[:, 1:2] = u1x
    o_ref[:, 2:3] = det * u0y
    o_ref[:, 3:4] = u1y


def _run_emlp_and_postproc(x, params):
    B = x.shape[0]

    # Batch tile: multiple of 16 (bf16 sublane packing), capped at MAX_TB.
    if B >= MAX_TB:
        tb = MAX_TB
    else:
        tb = max(16, _round_up(B, 16))
    b_pad = _round_up(B, tb)

    # Pad batch (to a tile multiple) and feature dim (112 -> 128, lane-dense x stream).
    x = jnp.pad(x, ((0, b_pad - B), (0, D_IN_PAD - D_IN)))
    x_bf16 = x.astype(jnp.bfloat16)

    flat_params = []
    for li, (w, b) in enumerate(params):
        if li == 0:
            # zero rows for the padded feature lanes -> identical result
            w = jnp.pad(w, ((0, D_IN_PAD - D_IN), (0, 0)))
        flat_params.append(w.astype(jnp.bfloat16))                 # weights streamed as bf16
        flat_params.append(b.reshape(1, -1).astype(jnp.float32))   # biases stay f32 (2D layout)

    grid = (b_pad // tb,)
    in_specs = [pl.BlockSpec((tb, D_IN_PAD), lambda i: (i, 0))]
    for p in flat_params:
        # Weights / biases: full-array blocks, constant index_map -> VMEM-resident, no re-DMA.
        in_specs.append(pl.BlockSpec(p.shape, lambda i: (0, 0)))

    out_flat = pl.pallas_call(
        _emlp_postproc_kernel,
        out_shape=jax.ShapeDtypeStruct((b_pad, D_OUT), jnp.float32),
        grid=grid,
        in_specs=in_specs,
        out_specs=pl.BlockSpec((tb, D_OUT), lambda i: (i, 0)),
        compiler_params=pltpu.CompilerParams(
            dimension_semantics=("parallel",)),     # v7x: shard batch axis over both TCs
    )(x_bf16, *flat_params)

    return out_flat[:B].reshape(B, 2, 2)


# ----------------------------------------------------------------------------------------
# Plain-JAX glue reproducing get_coords / get_vec / sample_noise / formatize_input.
# (Sort/top-k + gather has no clean Pallas equivalent; it stays in XLA.)
# ----------------------------------------------------------------------------------------
def get_coords():
    idx1 = jnp.array(list(range(-14, 0)) + list(range(1, 15)), dtype=jnp.float32)
    c1 = jnp.broadcast_to(idx1[None, :], (28, 28))
    idx2 = jnp.array(list(range(14, 0, -1)) + list(range(-1, -15, -1)), dtype=jnp.float32)
    c2 = jnp.broadcast_to(idx2[:, None], (28, 28))
    return jnp.stack([c1, c2], axis=0)                       # (2, 28, 28)


def get_vec(images):
    B = images.shape[0]
    coords = jnp.broadcast_to(get_coords()[None], (B, 2, 28, 28))
    x = jnp.concatenate([coords, images[:, None, :, :]], axis=1)   # (B, 3, 28, 28)
    x = jnp.transpose(x, (0, 2, 3, 1)).reshape(B, 28 * 28, 3)
    # top_k of the M brightest pixels (descending) instead of a full 784-element argsort.
    _, idx = jax.lax.top_k(x[:, :, 2], M)                          # (B, M)
    v = jnp.take_along_axis(x, idx[:, :, None], axis=1)            # (B, M, 3)
    mask = v[:, :, 2:3] < THRESHOLD
    v = jnp.where(mask, 0.0, v)                                    # zero whole rows
    return v


def sample_noise(key, B):
    angles = jax.random.uniform(key, (B, DZ), minval=0.0, maxval=2.0 * math.pi,
                                dtype=jnp.float32)
    Z = jnp.stack([jnp.cos(angles), jnp.sin(angles)], axis=1)      # (B, 2, dz)
    return Z * NOISE_SCALE


def formatize_input(v, Z):
    B = v.shape[0]
    intens = v[:, :, 2]                                            # (B, m)
    coord_flat = v[:, :, :2].reshape(B, 2 * M)                     # interleaved (x, y)
    Z_flat = jnp.transpose(Z, (0, 2, 1)).reshape(B, 2 * DZ)        # interleaved (cos, sin)
    return jnp.concatenate([intens, coord_flat, Z_flat], axis=1)   # (B, 3m + 2dz)


def equivariant_interface_forward(images, params, noise_key):
    v = get_vec(images)
    Z = sample_noise(noise_key, images.shape[0])
    x = formatize_input(v, Z)
    return _run_emlp_and_postproc(x, params)


# ----------------------------------------------------------------------------------------
# Deterministic parameter init (dense stand-in for the emlp_G stack, matching layer dims).
# ----------------------------------------------------------------------------------------
def init_params(key):
    dims = [D_IN] + NUM_LAYERS * [CH] + [D_OUT]
    params = []
    for i, (d_in, d_out) in enumerate(zip(dims[:-1], dims[1:])):
        kw, kb = jax.random.split(jax.random.fold_in(key, i))
        bound = 1.0 / math.sqrt(d_in)
        w = jax.random.uniform(kw, (d_in, d_out), minval=-bound, maxval=bound,
                               dtype=jnp.float32)
        b = jax.random.uniform(kb, (d_out,), minval=-bound, maxval=bound,
                               dtype=jnp.float32)
        params.append((w, b))
    return params


if __name__ == "__main__":
    key = jax.random.PRNGKey(0)
    k_img, k_noise = jax.random.split(key)
    B = 2
    images = jax.random.uniform(k_img, (B, 28, 28), dtype=jnp.float32)
    params = init_params(jax.random.PRNGKey(42))

    fwd = jax.jit(equivariant_interface_forward)
    out = fwd(images, params, k_noise)
    out = jax.block_until_ready(out)

    assert out.shape == (B, 2, 2)
    assert bool(jnp.all(jnp.isfinite(out)))
    print("KERNEL_OK")
</pallas_src>

<mosaic_0001>
module attributes {stable_mosaic.version = 11 : i64} {
  func.func @_emlp_postproc_kernel(%arg0: i32, %arg1: memref<16x128xbf16, #tpu.memory_space<vmem>>, %arg2: memref<128x32xbf16, #tpu.memory_space<vmem>>, %arg3: memref<1x32xf32, #tpu.memory_space<vmem>>, %arg4: memref<32x32xbf16, #tpu.memory_space<vmem>>, %arg5: memref<1x32xf32, #tpu.memory_space<vmem>>, %arg6: memref<32x32xbf16, #tpu.memory_space<vmem>>, %arg7: memref<1x32xf32, #tpu.memory_space<vmem>>, %arg8: memref<32x4xbf16, #tpu.memory_space<vmem>>, %arg9: memref<1x4xf32, #tpu.memory_space<vmem>>, %arg10: memref<16x4xf32, #tpu.memory_space<vmem>>) attributes {dimension_semantics = [#tpu.dimension_semantics<parallel>], iteration_bounds = array<i64: 1>, scalar_prefetch = 0 : i64, scratch_operands = 0 : i64, tpu.core_type = #tpu.core_type<tc>, window_params = [{transform_indices = @transform_0, window_bounds = array<i64: 16, 128>}, {pipeline_mode = #tpu.pipeline_mode<synchronous>, transform_indices = @transform_1, window_bounds = array<i64: 128, 32>}, {pipeline_mode = #tpu.pipeline_mode<synchronous>, transform_indices = @transform_2, window_bounds = array<i64: 1, 32>}, {pipeline_mode = #tpu.pipeline_mode<synchronous>, transform_indices = @transform_3, window_bounds = array<i64: 32, 32>}, {pipeline_mode = #tpu.pipeline_mode<synchronous>, transform_indices = @transform_4, window_bounds = array<i64: 1, 32>}, {pipeline_mode = #tpu.pipeline_mode<synchronous>, transform_indices = @transform_5, window_bounds = array<i64: 32, 32>}, {pipeline_mode = #tpu.pipeline_mode<synchronous>, transform_indices = @transform_6, window_bounds = array<i64: 1, 32>}, {pipeline_mode = #tpu.pipeline_mode<synchronous>, transform_indices = @transform_7, window_bounds = array<i64: 32, 4>}, {pipeline_mode = #tpu.pipeline_mode<synchronous>, transform_indices = @transform_8, window_bounds = array<i64: 1, 4>}, {transform_indices = @transform_9, window_bounds = array<i64: 16, 4>}]} {
    %c0 = arith.constant 0 : index
    %c0_0 = arith.constant 0 : index
    %0 = vector.load %arg1[%c0, %c0_0] : memref<16x128xbf16, #tpu.memory_space<vmem>>, vector<16x128xbf16>
    %c0_1 = arith.constant 0 : index
    %c0_2 = arith.constant 0 : index
    %1 = vector.load %arg2[%c0_1, %c0_2] : memref<128x32xbf16, #tpu.memory_space<vmem>>, vector<128x32xbf16>
    %cst = arith.constant dense<0.000000e+00> : vector<16x32xf32>
    %2 = tpu.matmul %0, %1, %cst {dimension_numbers = #tpu.dot_dimension_numbers<[1], [0], [0], [1], [0, 0, 1, 1], [], []>} : vector<16x128xbf16>, vector<128x32xbf16>, vector<16x32xf32> -> vector<16x32xf32>
    %c0_3 = arith.constant 0 : index
    %c0_4 = arith.constant 0 : index
    %3 = vector.load %arg3[%c0_3, %c0_4] : memref<1x32xf32, #tpu.memory_space<vmem>>, vector<1x32xf32>
    %4 = vector.broadcast %3 : vector<1x32xf32> to vector<16x32xf32>
    %5 = arith.addf %2, %4 : vector<16x32xf32>
    %6 = arith.negf %5 : vector<16x32xf32>
    %7 = math.exp %6 : vector<16x32xf32>
    %cst_5 = arith.constant 1.000000e+00 : f32
    %8 = vector.broadcast %cst_5 : f32 to vector<16x32xf32>
    %9 = arith.addf %8, %7 : vector<16x32xf32>
    %10 = arith.divf %8, %9 : vector<16x32xf32>
    %11 = arith.mulf %5, %10 : vector<16x32xf32>
    %12 = arith.truncf %11 : vector<16x32xf32> to vector<16x32xbf16>
    %c0_6 = arith.constant 0 : index
    %c0_7 = arith.constant 0 : index
    %13 = vector.load %arg4[%c0_6, %c0_7] : memref<32x32xbf16, #tpu.memory_space<vmem>>, vector<32x32xbf16>
    %cst_8 = arith.constant dense<0.000000e+00> : vector<16x32xf32>
    %14 = tpu.matmul %12, %13, %cst_8 {dimension_numbers = #tpu.dot_dimension_numbers<[1], [0], [0], [1], [0, 0, 1, 1], [], []>} : vector<16x32xbf16>, vector<32x32xbf16>, vector<16x32xf32> -> vector<16x32xf32>
    %c0_9 = arith.constant 0 : index
    %c0_10 = arith.constant 0 : index
    %15 = vector.load %arg5[%c0_9, %c0_10] : memref<1x32xf32, #tpu.memory_space<vmem>>, vector<1x32xf32>
    %16 = vector.broadcast %15 : vector<1x32xf32> to vector<16x32xf32>
    %17 = arith.addf %14, %16 : vector<16x32xf32>
    %18 = arith.negf %17 : vector<16x32xf32>
    %19 = math.exp %18 : vector<16x32xf32>
    %cst_11 = arith.constant 1.000000e+00 : f32
    %20 = vector.broadcast %cst_11 : f32 to vector<16x32xf32>
    %21 = arith.addf %20, %19 : vector<16x32xf32>
    %22 = arith.divf %20, %21 : vector<16x32xf32>
    %23 = arith.mulf %17, %22 : vector<16x32xf32>
    %24 = arith.truncf %23 : vector<16x32xf32> to vector<16x32xbf16>
    %c0_12 = arith.constant 0 : index
    %c0_13 = arith.constant 0 : index
    %25 = vector.load %arg6[%c0_12, %c0_13] : memref<32x32xbf16, #tpu.memory_space<vmem>>, vector<32x32xbf16>
    %cst_14 = arith.constant dense<0.000000e+00> : vector<16x32xf32>
    %26 = tpu.matmul %24, %25, %cst_14 {dimension_numbers = #tpu.dot_dimension_numbers<[1], [0], [0], [1], [0, 0, 1, 1], [], []>} : vector<16x32xbf16>, vector<32x32xbf16>, vector<16x32xf32> -> vector<16x32xf32>
    %c0_15 = arith.constant 0 : index
    %c0_16 = arith.constant 0 : index
    %27 = vector.load %arg7[%c0_15, %c0_16] : memref<1x32xf32, #tpu.memory_space<vmem>>, vector<1x32xf32>
    %28 = vector.broadcast %27 : vector<1x32xf32> to vector<16x32xf32>
    %29 = arith.addf %26, %28 : vector<16x32xf32>
    %30 = arith.negf %29 : vector<16x32xf32>
    %31 = math.exp %30 : vector<16x32xf32>
    %cst_17 = arith.constant 1.000000e+00 : f32
    %32 = vector.broadcast %cst_17 : f32 to vector<16x32xf32>
    %33 = arith.addf %32, %31 : vector<16x32xf32>
    %34 = arith.divf %32, %33 : vector<16x32xf32>
    %35 = arith.mulf %29, %34 : vector<16x32xf32>
    %36 = arith.truncf %35 : vector<16x32xf32> to vector<16x32xbf16>
    %c0_18 = arith.constant 0 : index
    %c0_19 = arith.constant 0 : index
    %37 = vector.load %arg8[%c0_18, %c0_19] : memref<32x4xbf16, #tpu.memory_space<vmem>>, vector<32x4xbf16>
    %cst_20 = arith.constant dense<0.000000e+00> : vector<16x4xf32>
    %38 = tpu.matmul %36, %37, %cst_20 {dimension_numbers = #tpu.dot_dimension_numbers<[1], [0], [0], [1], [0, 0, 1, 1], [], []>} : vector<16x32xbf16>, vector<32x4xbf16>, vector<16x4xf32> -> vector<16x4xf32>
    %c0_21 = arith.constant 0 : index
    %c0_22 = arith.constant 0 : index
    %39 = vector.load %arg9[%c0_21, %c0_22] : memref<1x4xf32, #tpu.memory_space<vmem>>, vector<1x4xf32>
    %40 = vector.broadcast %39 : vector<1x4xf32> to vector<16x4xf32>
    %41 = arith.addf %38, %40 : vector<16x4xf32>
    %42 = vector.extract_strided_slice %41 {offsets = [0, 0], sizes = [16, 1], strides = [1, 1]} : vector<16x4xf32> to vector<16x1xf32>
    %43 = vector.extract_strided_slice %41 {offsets = [0, 1], sizes = [16, 1], strides = [1, 1]} : vector<16x4xf32> to vector<16x1xf32>
    %44 = vector.extract_strided_slice %41 {offsets = [0, 2], sizes = [16, 1], strides = [1, 1]} : vector<16x4xf32> to vector<16x1xf32>
    %45 = vector.extract_strided_slice %41 {offsets = [0, 3], sizes = [16, 1], strides = [1, 1]} : vector<16x4xf32> to vector<16x1xf32>
    %46 = arith.mulf %42, %42 : vector<16x1xf32>
    %47 = arith.mulf %43, %43 : vector<16x1xf32>
    %48 = arith.addf %46, %47 : vector<16x1xf32>
    %cst_23 = arith.constant 9.99999996E-13 : f32
    %49 = vector.broadcast %cst_23 : f32 to vector<16x1xf32>
    %50 = arith.addf %48, %49 : vector<16x1xf32>
    %51 = math.rsqrt %50 : vector<16x1xf32>
    %52 = arith.mulf %42, %51 : vector<16x1xf32>
    %53 = arith.mulf %43, %51 : vector<16x1xf32>
    %54 = arith.mulf %44, %52 : vector<16x1xf32>
    %55 = arith.mulf %45, %53 : vector<16x1xf32>
    %56 = arith.addf %54, %55 : vector<16x1xf32>
    %57 = arith.mulf %56, %52 : vector<16x1xf32>
    %58 = arith.subf %44, %57 : vector<16x1xf32>
    %59 = arith.mulf %56, %53 : vector<16x1xf32>
    %60 = arith.subf %45, %59 : vector<16x1xf32>
    %61 = arith.mulf %58, %58 : vector<16x1xf32>
    %62 = arith.mulf %60, %60 : vector<16x1xf32>
    %63 = arith.addf %61, %62 : vector<16x1xf32>
    %cst_24 = arith.constant 9.99999996E-13 : f32
    %64 = vector.broadcast %cst_24 : f32 to vector<16x1xf32>
    %65 = arith.addf %63, %64 : vector<16x1xf32>
    %66 = math.rsqrt %65 : vector<16x1xf32>
    %67 = arith.mulf %58, %66 : vector<16x1xf32>
    %68 = arith.mulf %60, %66 : vector<16x1xf32>
    %69 = arith.mulf %52, %68 : vector<16x1xf32>
    %70 = arith.mulf %53, %67 : vector<16x1xf32>
    %71 = arith.subf %69, %70 : vector<16x1xf32>
    %72 = arith.mulf %71, %52 : vector<16x1xf32>
    %c0_25 = arith.constant 0 : index
    %c0_26 = arith.constant 0 : index
    %73 = vector.load %arg10[%c0_25, %c0_26] : memref<16x4xf32, #tpu.memory_space<vmem>>, vector<16x1xf32>
    tpu.vector_store %arg10[%c0_25, %c0_26], %72 {strides = array<i32>} : memref<16x4xf32, #tpu.memory_space<vmem>>, vector<16x1xf32>,
    %c0_27 = arith.constant 0 : index
    %c1 = arith.constant 1 : index
    %74 = vector.load %arg10[%c0_27, %c1] : memref<16x4xf32, #tpu.memory_space<vmem>>, vector<16x1xf32>
    tpu.vector_store %arg10[%c0_27, %c1], %67 {strides = array<i32>} : memref<16x4xf32, #tpu.memory_space<vmem>>, vector<16x1xf32>,
    %75 = arith.mulf %71, %53 : vector<16x1xf32>
    %c0_28 = arith.constant 0 : index
    %c2 = arith.constant 2 : index
    %76 = vector.load %arg10[%c0_28, %c2] : memref<16x4xf32, #tpu.memory_space<vmem>>, vector<16x1xf32>
    tpu.vector_store %arg10[%c0_28, %c2], %75 {strides = array<i32>} : memref<16x4xf32, #tpu.memory_space<vmem>>, vector<16x1xf32>,
    %c0_29 = arith.constant 0 : index
    %c3 = arith.constant 3 : index
    %77 = vector.load %arg10[%c0_29, %c3] : memref<16x4xf32, #tpu.memory_space<vmem>>, vector<16x1xf32>
    tpu.vector_store %arg10[%c0_29, %c3], %68 {strides = array<i32>} : memref<16x4xf32, #tpu.memory_space<vmem>>, vector<16x1xf32>,
    return
  }
  func.func @transform_0(%arg0: i32) -> (i32, i32) {
    %c0_i32 = arith.constant 0 : i32
    %c0_i32_0 = arith.constant 0 : i32
    return %arg0, %c0_i32 : i32, i32
  }
  func.func @transform_1(%arg0: i32) -> (i32, i32) {
    %c0_i32 = arith.constant 0 : i32
    %c0_i32_0 = arith.constant 0 : i32
    %c0_i32_1 = arith.constant 0 : i32
    return %c0_i32, %c0_i32_0 : i32, i32
  }
  func.func @transform_2(%arg0: i32) -> (i32, i32) {
    %c0_i32 = arith.constant 0 : i32
    %c0_i32_0 = arith.constant 0 : i32
    %c0_i32_1 = arith.constant 0 : i32
    return %c0_i32, %c0_i32_0 : i32, i32
  }
  func.func @transform_3(%arg0: i32) -> (i32, i32) {
    %c0_i32 = arith.constant 0 : i32
    %c0_i32_0 = arith.constant 0 : i32
    %c0_i32_1 = arith.constant 0 : i32
    return %c0_i32, %c0_i32_0 : i32, i32
  }
  func.func @transform_4(%arg0: i32) -> (i32, i32) {
    %c0_i32 = arith.constant 0 : i32
    %c0_i32_0 = arith.constant 0 : i32
    %c0_i32_1 = arith.constant 0 : i32
    return %c0_i32, %c0_i32_0 : i32, i32
  }
  func.func @transform_5(%arg0: i32) -> (i32, i32) {
    %c0_i32 = arith.constant 0 : i32
    %c0_i32_0 = arith.constant 0 : i32
    %c0_i32_1 = arith.constant 0 : i32
    return %c0_i32, %c0_i32_0 : i32, i32
  }
  func.func @transform_6(%arg0: i32) -> (i32, i32) {
    %c0_i32 = arith.constant 0 : i32
    %c0_i32_0 = arith.constant 0 : i32
    %c0_i32_1 = arith.constant 0 : i32
    return %c0_i32, %c0_i32_0 : i32, i32
  }
  func.func @transform_7(%arg0: i32) -> (i32, i32) {
    %c0_i32 = arith.constant 0 : i32
    %c0_i32_0 = arith.constant 0 : i32
    %c0_i32_1 = arith.constant 0 : i32
    return %c0_i32, %c0_i32_0 : i32, i32
  }
  func.func @transform_8(%arg0: i32) -> (i32, i32) {
    %c0_i32 = arith.constant 0 : i32
    %c0_i32_0 = arith.constant 0 : i32
    %c0_i32_1 = arith.constant 0 : i32
    return %c0_i32, %c0_i32_0 : i32, i32
  }
  func.func @transform_9(%arg0: i32) -> (i32, i32) {
    %c0_i32 = arith.constant 0 : i32
    %c0_i32_0 = arith.constant 0 : i32
    return %arg0, %c0_i32 : i32, i32
  }
}

</mosaic_0001>

<llo_original>
// kernel: equivariant_interface_forward.1
$region0: #{equivariant_interface_forward.1}
  #allocation0 [shape = 'u32[]', space=smem, size = 0x4, offset = 0x4, fixed_abs, tag = 'smem constant byte address 0x4 - core index']
  #allocation1 [shape = 'u32[144,128]{1,0:T(1,128)}', space=vmem, size = 0x12000, scoped, tag = 'internal scratch']
  %s0 = inlined_call_operand.vmem [shape: bf16[16,128], index: 0, kind: input, shape index: {}]
  %s1 = inlined_call_operand.vmem [shape: bf16[128,32], index: 1, kind: input, shape index: {}]
  %s2 = inlined_call_operand.vmem [shape: f32[1,32], index: 2, kind: input, shape index: {}]
  %s3 = inlined_call_operand.vmem [shape: bf16[32,32], index: 3, kind: input, shape index: {}]
  %s4 = inlined_call_operand.vmem [shape: f32[1,32], index: 4, kind: input, shape index: {}]
  %s5 = inlined_call_operand.vmem [shape: bf16[32,32], index: 5, kind: input, shape index: {}]
  %s6 = inlined_call_operand.vmem [shape: f32[1,32], index: 6, kind: input, shape index: {}]
  %s7 = inlined_call_operand.vmem [shape: bf16[32,4], index: 7, kind: input, shape index: {}]
  %s8 = inlined_call_operand.vmem [shape: f32[1,4], index: 8, kind: input, shape index: {}]
  %s9 = inlined_call_operand.vmem [shape: f32[16,4], index: 9, kind: output, shape index: {}]
  %s10 = sld [smem:[#allocation0]]
  $region46: #{equivariant_interface_forward.1} parent=0
    _
  %s12 = ssub.s32 1, %s10
  %s13 = scalar_select 0, %s12, %s10
  // Predicated region
  $region2: #{equivariant_interface_forward.1} parent=0 // pred_check
    _
  $region3: #{equivariant_interface_forward.1} parent=0 // pred_check_branch
    %15 = sbr.rel (0) target = $region5
  $region4: #{equivariant_interface_forward.1} parent=0 // pred_region
    _
  $region5: #{equivariant_interface_forward.1} parent=0 // pred_fallthru
    _
  // Predicated region
  $region6: #{equivariant_interface_forward.1} parent=0 // pred_check
    _
  $region7: #{equivariant_interface_forward.1} parent=0 // pred_check_branch
    %17 = sbr.rel (0) target = $region9
  $region8: #{equivariant_interface_forward.1} parent=0 // pred_region
    _
  $region9: #{equivariant_interface_forward.1} parent=0 // pred_fallthru
    _
  // Predicated region
  $region10: #{equivariant_interface_forward.1} parent=0 // pred_check
    _
  $region11: #{equivariant_interface_forward.1} parent=0 // pred_check_branch
    %19 = sbr.rel (0) target = $region13
  $region12: #{equivariant_interface_forward.1} parent=0 // pred_region
    _
  $region13: #{equivariant_interface_forward.1} parent=0 // pred_fallthru
    _
  // Predicated region
  $region14: #{equivariant_interface_forward.1} parent=0 // pred_check
    _
  $region15: #{equivariant_interface_forward.1} parent=0 // pred_check_branch
    %21 = sbr.rel (0) target = $region17
  $region16: #{equivariant_interface_forward.1} parent=0 // pred_region
    _
  $region17: #{equivariant_interface_forward.1} parent=0 // pred_fallthru
    _
  // Predicated region
  $region18: #{equivariant_interface_forward.1} parent=0 // pred_check
    _
  $region19: #{equivariant_interface_forward.1} parent=0 // pred_check_branch
    %23 = sbr.rel (0) target = $region21
  $region20: #{equivariant_interface_forward.1} parent=0 // pred_region
    _
  $region21: #{equivariant_interface_forward.1} parent=0 // pred_fallthru
    _
  // Predicated region
  $region22: #{equivariant_interface_forward.1} parent=0 // pred_check
    _
  $region23: #{equivariant_interface_forward.1} parent=0 // pred_check_branch
    %25 = sbr.rel (0) target = $region25
  $region24: #{equivariant_interface_forward.1} parent=0 // pred_region
    _
  $region25: #{equivariant_interface_forward.1} parent=0 // pred_fallthru
    _
  // Predicated region
  $region26: #{equivariant_interface_forward.1} parent=0 // pred_check
    _
  $region27: #{equivariant_interface_forward.1} parent=0 // pred_check_branch
    %27 = sbr.rel (0) target = $region29
  $region28: #{equivariant_interface_forward.1} parent=0 // pred_region
    _
  $region29: #{equivariant_interface_forward.1} parent=0 // pred_fallthru
    _
  // Predicated region
  $region30: #{equivariant_interface_forward.1} parent=0 // pred_check
    _
  $region31: #{equivariant_interface_forward.1} parent=0 // pred_check_branch
    %29 = sbr.rel (0) target = $region33
  $region32: #{equivariant_interface_forward.1} parent=0 // pred_region
    _
  $region33: #{equivariant_interface_forward.1} parent=0 // pred_fallthru
    _
  // Predicated region
  $region34: #{equivariant_interface_forward.1} parent=0 // pred_check
    _
  $region35: #{equivariant_interface_forward.1} parent=0 // pred_check_branch
    %31 = sbr.rel (0) target = $region37
  $region36: #{equivariant_interface_forward.1} parent=0 // pred_region
    _
  $region37: #{equivariant_interface_forward.1} parent=0 // pred_fallthru
    _
  %v33 = vld [vmem:[%s0] sm:$0xf]
  %v34 = vld [vmem:[%s0 + $0x4] sm:$0xf]
  %v35 = vld [vmem:[%s1] sm:$0xf]
  %v36 = vld [vmem:[%s1 + $0x4] sm:$0xf]
  %v37 = vld [vmem:[%s1 + $0x8] sm:$0xf]
  %v38 = vld [vmem:[%s1 + $0xc] sm:$0xf]
  %v39 = vld [vmem:[%s1 + $0x10] sm:$0xf]
  %v40 = vld [vmem:[%s1 + $0x14] sm:$0xf]
  %v41 = vld [vmem:[%s1 + $0x18] sm:$0xf]
  %v42 = vld [vmem:[%s1 + $0x1c] sm:$0xf]
  %v43 = vld [vmem:[%s1 + $0x20] sm:$0xf]
  %v44 = vld [vmem:[%s1 + $0x24] sm:$0xf]
  %v45 = vld [vmem:[%s1 + $0x28] sm:$0xf]
  %v46 = vld [vmem:[%s1 + $0x2c] sm:$0xf]
  %v47 = vld [vmem:[%s1 + $0x30] sm:$0xf]
  %v48 = vld [vmem:[%s1 + $0x34] sm:$0xf]
  %v49 = vld [vmem:[%s1 + $0x38] sm:$0xf]
  %v50 = vld [vmem:[%s1 + $0x3c] sm:$0xf]
  %v51 = vld [vmem:[%s2] sm:$0x1]
  %v53 = vlaneseq
  %v54 = vshrl.u32 %v53, 7
  %v55 = vsub.s32 0, %v54
  %v56 = vrot.slane %v51, %v55
  %v60 = vunpack.c.l.b16 %v33
  %v61 = vunpack.c.l.b16 %v34
  %v62 = vpack.c.b16 %v61, %v60
  %v80 = vunpack.c.l.b16 %v35
  %v81 = vunpack.c.l.b16 %v36
  %v82 = vunpack.c.l.b16 %v37
  %v83 = vunpack.c.l.b16 %v38
  %v84 = vunpack.c.l.b16 %v39
  %v85 = vunpack.c.l.b16 %v40
  %v86 = vunpack.c.l.b16 %v41
  %v87 = vunpack.c.l.b16 %v42
  %v88 = vunpack.c.l.b16 %v43
  %v89 = vunpack.c.l.b16 %v44
  %v90 = vunpack.c.l.b16 %v45
  %v91 = vunpack.c.l.b16 %v46
  %v92 = vunpack.c.l.b16 %v47
  %v93 = vunpack.c.l.b16 %v48
  %v94 = vunpack.c.l.b16 %v49
  %v95 = vunpack.c.l.b16 %v50
  %v96 = vpack.c.b16 %v81, %v80
  %v97 = vpack.c.b16 %v83, %v82
  %v98 = vpack.c.b16 %v85, %v84
  %v99 = vpack.c.b16 %v87, %v86
  %v100 = vpack.c.b16 %v89, %v88
  %v101 = vpack.c.b16 %v91, %v90
  %v102 = vpack.c.b16 %v93, %v92
  %v103 = vpack.c.b16 %v95, %v94
  %112 = vmatprep.subr.bf16.mxu0 0
  %113 = vmatpush1.bf16.msra.mxu0 %v103
  %114 = vmatprep.subr.bf16.mxu0 0
  %115 = vmatpush1.bf16.msra.mxu0 %v102
  %116 = vmatprep.subr.bf16.mxu0 0
  %117 = vmatpush1.bf16.msra.mxu0 %v101
  %118 = vmatprep.subr.bf16.mxu0 0
  %119 = vmatpush1.bf16.msra.mxu0 %v100
  %120 = vmatprep.subr.bf16.mxu0 0
  %121 = vmatpush1.bf16.msra.mxu0 %v99
  %122 = vmatprep.subr.bf16.mxu0 0
  %123 = vmatpush1.bf16.msra.mxu0 %v98
  %124 = vmatprep.subr.bf16.mxu0 0
  %125 = vmatpush1.bf16.msra.mxu0 %v97
  %126 = vmatprep.subr.bf16.mxu0 0
  %127 = vmatpush1.bf16.msra.mxu0 %v96
  %128 = vmatprep.subr.bf16.mxu0 0
  %129 = vmatpush2.bf16.msra.mxu0 0
  %130 = vmatprep.subr.bf16.mxu0 0
  %131 = vmatpush2.bf16.msra.mxu0 0
  %132 = vmatprep.subr.bf16.mxu0 0
  %133 = vmatpush2.bf16.msra.mxu0 0
  %134 = vmatprep.subr.bf16.mxu0 0
  %135 = vmatpush2.bf16.msra.mxu0 0
  %136 = vmatprep.subr.bf16.mxu0 0
  %137 = vmatpush2.bf16.msra.mxu0 0
  %138 = vmatprep.subr.bf16.mxu0 0
  %139 = vmatpush2.bf16.msra.mxu0 0
  %140 = vmatprep.subr.bf16.mxu0 0
  %141 = vmatpush2.bf16.msra.mxu0 0
  %142 = vmatprep.subr.bf16.mxu0 0
  %143 = vmatpush2.bf16.msra.mxu0 0
  %144 = vmatprep.mubr.bf16.mxu0 0
  %145 = vmatmul.mubr.bf16.gmra.mxu0 %v62
  %v146 = vpop.f32.mrf.mxu0
  %v147 = vadd.f32 %v56, %v146
  %v148 = vpop.f32.mrf.mxu0
  %v149 = vpop.f32.mrf.mxu0
  %v150 = vadd.f32 %v56, %v149
  %v151 = vpop.f32.mrf.mxu0
  %152 = vdwg.mxu0
  %v153 = vxor.u32 %v147, 2147483648
  %v154 = vxor.u32 %v150, 2147483648
  %v155 = vmul.f32 %v153, 1.442695
  %v156 = vpow.pop %v155
  %v157 = vmul.f32 %v154, 1.442695
  %v158 = vpow.pop %v157
  %v159 = vadd.f32 %v156, 1.0
  %v160 = vadd.f32 %v158, 1.0
  %v161 = vrcp.pop %v159
  %v162 = vmul.f32 1.0, %v161
  %v163 = vrcp.pop %v160
  %v164 = vmul.f32 1.0, %v163
  %v165 = vmul.f32 %v147, %v162
  %v166 = vmul.f32 %v150, %v164
  %v167 = vpack.c.bf16 %v166, %v165
  %v168 = vld [vmem:[%s3] sm:$0xf]
  %v169 = vld [vmem:[%s3 + $0x4] sm:$0xf]
  %v170 = vld [vmem:[%s3 + $0x8] sm:$0xf]
  %v171 = vld [vmem:[%s3 + $0xc] sm:$0xf]
  %v172 = vld [vmem:[%s4] sm:$0x1]
  %v174 = vlaneseq
  %v175 = vshrl.u32 %v174, 7
  %v176 = vsub.s32 0, %v175
  %v177 = vrot.slane %v172, %v176
  %v183 = vunpack.c.l.b16 %v168
  %v184 = vunpack.c.l.b16 %v169
  %v185 = vunpack.c.l.b16 %v170
  %v186 = vunpack.c.l.b16 %v171
  %v187 = vpack.c.b16 %v184, %v183
  %v188 = vpack.c.b16 %v186, %v185
  %vm191 = vcmask 261120
  %v193 = vsel %vm191, %v167, 0
  %195 = vmatprep.subr.bf16.mxu0 0
  %196 = vmatpush1.bf16.msra.mxu0 0
  %197 = vmatprep.subr.bf16.mxu0 0
  %198 = vmatpush1.bf16.msra.mxu0 0
  %199 = vmatprep.subr.bf16.mxu0 0
  %200 = vmatpush1.bf16.msra.mxu0 0
  %201 = vmatprep.subr.bf16.mxu0 0
  %202 = vmatpush1.bf16.msra.mxu0 0
  %203 = vmatprep.subr.bf16.mxu0 0
  %204 = vmatpush1.bf16.msra.mxu0 0
  %205 = vmatprep.subr.bf16.mxu0 0
  %206 = vmatpush1.bf16.msra.mxu0 0
  %207 = vmatprep.subr.bf16.mxu0 0
  %208 = vmatpush1.bf16.msra.mxu0 %v188
  %209 = vmatprep.subr.bf16.mxu0 0
  %210 = vmatpush1.bf16.msra.mxu0 %v187
  %211 = vmatprep.subr.bf16.mxu0 0
  %212 = vmatpush2.bf16.msra.mxu0 0
  %213 = vmatprep.subr.bf16.mxu0 0
  %214 = vmatpush2.bf16.msra.mxu0 0
  %215 = vmatprep.subr.bf16.mxu0 0
  %216 = vmatpush2.bf16.msra.mxu0 0
  %217 = vmatprep.subr.bf16.mxu0 0
  %218 = vmatpush2.bf16.msra.mxu0 0
  %219 = vmatprep.subr.bf16.mxu0 0
  %220 = vmatpush2.bf16.msra.mxu0 0
  %221 = vmatprep.subr.bf16.mxu0 0
  %222 = vmatpush2.bf16.msra.mxu0 0
  %223 = vmatprep.subr.bf16.mxu0 0
  %224 = vmatpush2.bf16.msra.mxu0 0
  %225 = vmatprep.subr.bf16.mxu0 0
  %226 = vmatpush2.bf16.msra.mxu0 0
  %227 = vmatprep.mubr.bf16.mxu0 0
  %228 = vmatmul.mubr.bf16.gmra.mxu0 %v193
  %v229 = vpop.f32.mrf.mxu0
  %v230 = vadd.f32 %v177, %v229
  %v231 = vpop.f32.mrf.mxu0
  %v232 = vpop.f32.mrf.mxu0
  %v233 = vadd.f32 %v177, %v232
  %v234 = vpop.f32.mrf.mxu0
  %235 = vdwg.mxu0
  %v236 = vxor.u32 %v230, 2147483648
  %v237 = vxor.u32 %v233, 2147483648
  %v238 = vmul.f32 %v236, 1.442695
  %v239 = vpow.pop %v238
  %v240 = vmul.f32 %v237, 1.442695
  %v241 = vpow.pop %v240
  %v242 = vadd.f32 %v239, 1.0
  %v243 = vadd.f32 %v241, 1.0
  %v244 = vrcp.pop %v242
  %v245 = vmul.f32 1.0, %v244
  %v246 = vrcp.pop %v243
  %v247 = vmul.f32 1.0, %v246
  %v248 = vmul.f32 %v230, %v245
  %v249 = vmul.f32 %v233, %v247
  %v250 = vpack.c.bf16 %v249, %v248
  %v251 = vld [vmem:[%s5] sm:$0xf]
  %v252 = vld [vmem:[%s5 + $0x4] sm:$0xf]
  %v253 = vld [vmem:[%s5 + $0x8] sm:$0xf]
  %v254 = vld [vmem:[%s5 + $0xc] sm:$0xf]
  %v255 = vld [vmem:[%s6] sm:$0x1]
  %v257 = vlaneseq
  %v258 = vshrl.u32 %v257, 7
  %v259 = vsub.s32 0, %v258
  %v260 = vrot.slane %v255, %v259
  %v266 = vunpack.c.l.b16 %v251
  %v267 = vunpack.c.l.b16 %v252
  %v268 = vunpack.c.l.b16 %v253
  %v269 = vunpack.c.l.b16 %v254
  %v270 = vpack.c.b16 %v267, %v266
  %v271 = vpack.c.b16 %v269, %v268
  %v275 = vsel %vm191, %v250, 0
  %277 = vmatprep.subr.bf16.mxu0 0
  %278 = vmatpush1.bf16.msra.mxu0 0
  %279 = vmatprep.subr.bf16.mxu0 0
  %280 = vmatpush1.bf16.msra.mxu0 0
  %281 = vmatprep.subr.bf16.mxu0 0
  %282 = vmatpush1.bf16.msra.mxu0 0
  %283 = vmatprep.subr.bf16.mxu0 0
  %284 = vmatpush1.bf16.msra.mxu0 0
  %285 = vmatprep.subr.bf16.mxu0 0
  %286 = vmatpush1.bf16.msra.mxu0 0
  %287 = vmatprep.subr.bf16.mxu0 0
  %288 = vmatpush1.bf16.msra.mxu0 0
  %289 = vmatprep.subr.bf16.mxu0 0
  %290 = vmatpush1.bf16.msra.mxu0 %v271
  %291 = vmatprep.subr.bf16.mxu0 0
  %292 = vmatpush1.bf16.msra.mxu0 %v270
  %293 = vmatprep.subr.bf16.mxu0 0
  %294 = vmatpush2.bf16.msra.mxu0 0
  %295 = vmatprep.subr.bf16.mxu0 0
  %296 = vmatpush2.bf16.msra.mxu0 0
  %297 = vmatprep.subr.bf16.mxu0 0
  %298 = vmatpush2.bf16.msra.mxu0 0
  %299 = vmatprep.subr.bf16.mxu0 0
  %300 = vmatpush2.bf16.msra.mxu0 0
  %301 = vmatprep.subr.bf16.mxu0 0
  %302 = vmatpush2.bf16.msra.mxu0 0
  %303 = vmatprep.subr.bf16.mxu0 0
  %304 = vmatpush2.bf16.msra.mxu0 0
  %305 = vmatprep.subr.bf16.mxu0 0
  %306 = vmatpush2.bf16.msra.mxu0 0
  %307 = vmatprep.subr.bf16.mxu0 0
  %308 = vmatpush2.bf16.msra.mxu0 0
  %309 = vmatprep.mubr.bf16.mxu0 0
  %310 = vmatmul.mubr.bf16.gmra.mxu0 %v275
  %v311 = vpop.f32.mrf.mxu0
  %v312 = vadd.f32 %v260, %v311
  %v313 = vpop.f32.mrf.mxu0
  %v314 = vpop.f32.mrf.mxu0
  %v315 = vadd.f32 %v260, %v314
  %v316 = vpop.f32.mrf.mxu0
  %317 = vdwg.mxu0
  %v318 = vxor.u32 %v312, 2147483648
  %v319 = vxor.u32 %v315, 2147483648
  %v320 = vmul.f32 %v318, 1.442695
  %v321 = vpow.pop %v320
  %v322 = vmul.f32 %v319, 1.442695
  %v323 = vpow.pop %v322
  %v324 = vadd.f32 %v321, 1.0
  %v325 = vadd.f32 %v323, 1.0
  %v326 = vrcp.pop %v324
  %v327 = vmul.f32 1.0, %v326
  %v328 = vrcp.pop %v325
  %v329 = vmul.f32 1.0, %v328
  %v330 = vmul.f32 %v312, %v327
  %v331 = vmul.f32 %v315, %v329
  %v332 = vpack.c.bf16 %v331, %v330
  %v333 = vld [vmem:[%s7] sm:$0xf]
  %v334 = vld [vmem:[%s7 + $0x4] sm:$0xf]
  %v335 = vld [vmem:[%s7 + $0x8] sm:$0xf]
  %v336 = vld [vmem:[%s7 + $0xc] sm:$0xf]
  %v337 = vld [vmem:[%s8] sm:$0x1]
  %v339 = vlaneseq
  %v340 = vshrl.u32 %v339, 7
  %v341 = vsub.s32 0, %v340
  %v342 = vrot.slane %v337, %v341
  %v348 = vunpack.c.l.b16 %v333
  %v349 = vunpack.c.l.b16 %v334
  %v350 = vunpack.c.l.b16 %v335
  %v351 = vunpack.c.l.b16 %v336
  %v352 = vpack.c.b16 %v349, %v348
  %v353 = vpack.c.b16 %v351, %v350
  %v357 = vsel %vm191, %v332, 0
  %359 = vmatprep.subr.bf16.mxu0 0
  %360 = vmatpush1.bf16.msra.mxu0 0
  %361 = vmatprep.subr.bf16.mxu0 0
  %362 = vmatpush1.bf16.msra.mxu0 0
  %363 = vmatprep.subr.bf16.mxu0 0
  %364 = vmatpush1.bf16.msra.mxu0 0
  %365 = vmatprep.subr.bf16.mxu0 0
  %366 = vmatpush1.bf16.msra.mxu0 0
  %367 = vmatprep.subr.bf16.mxu0 0
  %368 = vmatpush1.bf16.msra.mxu0 0
  %369 = vmatprep.subr.bf16.mxu0 0
  %370 = vmatpush1.bf16.msra.mxu0 0
  %371 = vmatprep.subr.bf16.mxu0 0
  %372 = vmatpush1.bf16.msra.mxu0 %v353
  %373 = vmatprep.subr.bf16.mxu0 0
  %374 = vmatpush1.bf16.msra.mxu0 %v352
  %375 = vmatprep.subr.bf16.mxu0 0
  %376 = vmatpush2.bf16.msra.mxu0 0
  %377 = vmatprep.subr.bf16.mxu0 0
  %378 = vmatpush2.bf16.msra.mxu0 0
  %379 = vmatprep.subr.bf16.mxu0 0
  %380 = vmatpush2.bf16.msra.mxu0 0
  %381 = vmatprep.subr.bf16.mxu0 0
  %382 = vmatpush2.bf16.msra.mxu0 0
  %383 = vmatprep.subr.bf16.mxu0 0
  %384 = vmatpush2.bf16.msra.mxu0 0
  %385 = vmatprep.subr.bf16.mxu0 0
  %386 = vmatpush2.bf16.msra.mxu0 0
  %387 = vmatprep.subr.bf16.mxu0 0
  %388 = vmatpush2.bf16.msra.mxu0 0
  %389 = vmatprep.subr.bf16.mxu0 0
  %390 = vmatpush2.bf16.msra.mxu0 0
  %391 = vmatprep.mubr.bf16.mxu0 0
  %392 = vmatmul.mubr.bf16.gmra.mxu0 %v357
  %v393 = vpop.f32.mrf.mxu0
  %v394 = vadd.f32 %v342, %v393
  %v395 = vpop.f32.mrf.mxu0
  %v396 = vpop.f32.mrf.mxu0
  %v397 = vadd.f32 %v342, %v396
  %v398 = vpop.f32.mrf.mxu0
  %399 = vdwg.mxu0
  %v400 = vmul.f32 %v394, %v394
  %v401 = vmul.f32 %v397, %v397
  %404 = vrot.lane.b32.xlu0 %v400, 127
  %v405 = vpop.permute.xlu0 %404
  %406 = vrot.lane.b32.xlu0 %v401, 127
  %v407 = vpop.permute.xlu0 %406
  %v410 = vadd.f32 %v400, %v405
  %v411 = vadd.f32 %v401, %v407
  %v412 = vadd.f32 %v410, 1e-12
  %v413 = vadd.f32 %v411, 1e-12
  %v414 = vrsqrt.pop %v412
  %v415 = vrsqrt.pop %v413
  %v416 = vmul.f32 %v394, %v414
  %v417 = vmul.f32 %v397, %v415
  %420 = vrot.lane.b32.xlu0 %v414, 1
  %v421 = vpop.permute.xlu0 %420
  %422 = vrot.lane.b32.xlu0 %v415, 1
  %v423 = vpop.permute.xlu0 %422
  %v426 = vmul.f32 %v394, %v421
  %v427 = vmul.f32 %v397, %v423
  %430 = vrot.lane.b32.xlu0 %v416, 2
  %v431 = vpop.permute.xlu0 %430
  %432 = vrot.lane.b32.xlu0 %v417, 2
  %v433 = vpop.permute.xlu0 %432
  %v436 = vmul.f32 %v394, %v431
  %v437 = vmul.f32 %v397, %v433
  %440 = vrot.lane.b32.xlu0 %v426, 2
  %v441 = vpop.permute.xlu0 %440
  %442 = vrot.lane.b32.xlu0 %v427, 2
  %v443 = vpop.permute.xlu0 %442
  %v446 = vmul.f32 %v394, %v441
  %v447 = vmul.f32 %v397, %v443
  %450 = vrot.lane.b32.xlu0 %v446, 127
  %v451 = vpop.permute.xlu0 %450
  %452 = vrot.lane.b32.xlu0 %v447, 127
  %v453 = vpop.permute.xlu0 %452
  %v456 = vadd.f32 %v436, %v451
  %v457 = vadd.f32 %v437, %v453
  %v458 = vmul.f32 %v456, %v431
  %v459 = vmul.f32 %v457, %v433
  %v460 = vsub.f32 %v394, %v458
  %v461 = vsub.f32 %v397, %v459
  %462 = vrot.lane.b32.xlu0 %v426, 1
  %v463 = vpop.permute.xlu0 %462
  %464 = vrot.lane.b32.xlu0 %v427, 1
  %v465 = vpop.permute.xlu0 %464
  %v468 = vmul.f32 %v456, %v463
  %v469 = vmul.f32 %v457, %v465
  %472 = vrot.lane.b32.xlu0 %v468, 1
  %v473 = vpop.permute.xlu0 %472
  %474 = vrot.lane.b32.xlu0 %v469, 1
  %v475 = vpop.permute.xlu0 %474
  %v478 = vsub.f32 %v394, %v473
  %v479 = vsub.f32 %v397, %v475
  %v480 = vmul.f32 %v460, %v460
  %v481 = vmul.f32 %v461, %v461
  %v482 = vmul.f32 %v478, %v478
  %v483 = vmul.f32 %v479, %v479
  %486 = vrot.lane.b32.xlu0 %v482, 127
  %v487 = vpop.permute.xlu0 %486
  %488 = vrot.lane.b32.xlu0 %v483, 127
  %v489 = vpop.permute.xlu0 %488
  %v492 = vadd.f32 %v480, %v487
  %v493 = vadd.f32 %v481, %v489
  %v494 = vadd.f32 %v492, 1e-12
  %v495 = vadd.f32 %v493, 1e-12
  %v496 = vrsqrt.pop %v494
  %v497 = vrsqrt.pop %v495
  %v498 = vmul.f32 %v460, %v496
  %v499 = vmul.f32 %v461, %v497
  %502 = vrot.lane.b32.xlu0 %v496, 1
  %v503 = vpop.permute.xlu0 %502
  %504 = vrot.lane.b32.xlu0 %v497, 1
  %v505 = vpop.permute.xlu0 %504
  %v508 = vmul.f32 %v478, %v503
  %v509 = vmul.f32 %v479, %v505
  %512 = vrot.lane.b32.xlu0 %v508, 125
  %v513 = vpop.permute.xlu0 %512
  %514 = vrot.lane.b32.xlu0 %v509, 125
  %v515 = vpop.permute.xlu0 %514
  %v518 = vmul.f32 %v416, %v513
  %v519 = vmul.f32 %v417, %v515
  %522 = vrot.lane.b32.xlu0 %v498, 127
  %v523 = vpop.permute.xlu0 %522
  %524 = vrot.lane.b32.xlu0 %v499, 127
  %v525 = vpop.permute.xlu0 %524
  %v528 = vmul.f32 %v426, %v523
  %v529 = vmul.f32 %v427, %v525
  %532 = vrot.lane.b32.xlu0 %v528, 127
  %v533 = vpop.permute.xlu0 %532
  %534 = vrot.lane.b32.xlu0 %v529, 127
  %v535 = vpop.permute.xlu0 %534
  %v538 = vsub.f32 %v518, %v533
  %v539 = vsub.f32 %v519, %v535
  %v540 = vmul.f32 %v538, %v416
  %v541 = vmul.f32 %v539, %v417
  %vm542 = vcmask 7168
  %543 = vst.msk [vmem:[%s9] sm:$0xff] %vm542, %v540
  %544 = vst.msk [vmem:[%s9 + $0x8] sm:$0xff] %vm542, %v541
  %vm545 = vcmask 15368
  %546 = vst.msk [vmem:[%s9] sm:$0xff] %vm545, %v523
  %547 = vst.msk [vmem:[%s9 + $0x8] sm:$0xff] %vm545, %v525
  %548 = vrot.lane.b32.xlu0 %v426, 127
  %v549 = vpop.permute.xlu0 %548
  %550 = vrot.lane.b32.xlu0 %v427, 127
  %v551 = vpop.permute.xlu0 %550
  %v554 = vmul.f32 %v538, %v549
  %v555 = vmul.f32 %v539, %v551
  %558 = vrot.lane.b32.xlu0 %v554, 2
  %v559 = vpop.permute.xlu0 %558
  %560 = vrot.lane.b32.xlu0 %v555, 2
  %v561 = vpop.permute.xlu0 %560
  %vm564 = vcmask 23568
  %565 = vst.msk [vmem:[%s9] sm:$0xff] %vm564, %v559
  %566 = vst.msk [vmem:[%s9 + $0x8] sm:$0xff] %vm564, %v561
  %vm567 = vcmask 31768
  %568 = vst.msk [vmem:[%s9] sm:$0xff] %vm567, %v508
  %569 = vst.msk [vmem:[%s9 + $0x8] sm:$0xff] %vm567, %v509
  // Predicated region
  $region38: #{equivariant_interface_forward.1} parent=0 // pred_check
    _
  $region39: #{equivariant_interface_forward.1} parent=0 // pred_check_branch
    %571 = sbr.rel (0) target = $region41
  $region40: #{equivariant_interface_forward.1} parent=0 // pred_region
    _
  $region41: #{equivariant_interface_forward.1} parent=0 // pred_fallthru
    _
  // Predicated region
  $region42: #{equivariant_interface_forward.1} parent=0 // pred_check
    _
  $region43: #{equivariant_interface_forward.1} parent=0 // pred_check_branch
    %573 = sbr.rel (0) target = $region45
  $region44: #{equivariant_interface_forward.1} parent=0 // pred_region
    _
  $region45: #{equivariant_interface_forward.1} parent=0 // pred_fallthru
    _

</llo_original>
